<compile_context>
chip_gen: v5e
topology: v5e:2x2
jax: 0.10.0
libtpu: 0.0.40
codegen_flags: <defaults>
</compile_context>

<pallas_src>
import functools

import jax
import jax.numpy as jnp
from jax.experimental import pallas as pl
from jax.experimental.pallas import tpu as pltpu


def _lane_fold(a):
    """Fold (tb, ts) down to (tb, 128) with VALU adds over static 128-lane slices."""
    ts = a.shape[-1]
    acc = a[:, 0:128]
    for c in range(1, ts // 128):
        lo = c * 128
        acc = acc + a[:, lo:lo + 128]
    return acc


def _mse_masked_kernel(x_ref, t_ref, m_ref, out_ref, sum_acc, cnt_acc):
    k = pl.program_id(1)

    @pl.when(k == 0)
    def _():
        sum_acc[...] = jnp.zeros_like(sum_acc)
        cnt_acc[...] = jnp.zeros_like(cnt_acc)

    x = x_ref[...].astype(jnp.float32)
    t = t_ref[...].astype(jnp.float32)
    m = m_ref[...].astype(jnp.float32)
    d = x - t
    sum_acc[...] += _lane_fold(d * d * m)
    cnt_acc[...] += _lane_fold(m)

    @pl.when(k == pl.num_programs(1) - 1)
    def _():
        s_row = jnp.sum(sum_acc[...], axis=-1, keepdims=True)   # one XLU reduce / block
        c_row = jnp.sum(cnt_acc[...], axis=-1, keepdims=True)
        # Plain divide: PyTorch parity (all-masked rows -> NaN). Padded rows are
        # sliced off in the wrapper before the batch mean.
        out_ref[...] = s_row / c_row


def _mse_unmasked_kernel(x_ref, t_ref, out_ref, sum_acc, *, seq_len):
    k = pl.program_id(1)

    @pl.when(k == 0)
    def _():
        sum_acc[...] = jnp.zeros_like(sum_acc)

    x = x_ref[...].astype(jnp.float32)
    t = t_ref[...].astype(jnp.float32)
    d = x - t
    sum_acc[...] += _lane_fold(d * d)

    @pl.when(k == pl.num_programs(1) - 1)
    def _():
        out_ref[...] = jnp.sum(sum_acc[...], axis=-1, keepdims=True) / seq_len


def _round_up(n, m):
    return ((n + m - 1) // m) * m


def _pick_divisor_tile(n, base, cap):
    """Largest multiple of `base` that divides `n`, at most `cap`. Requires n % base == 0."""
    t = min(n, (cap // base) * base)
    while n % t:
        t -= base
    return t


def _pad2d(a, rows, cols):
    pr, pc = rows - a.shape[0], cols - a.shape[1]
    if pr or pc:
        a = jnp.pad(a, ((0, pr), (0, pc)))
    return a


def mse_loss(logits, targets, masks=None):
    assert logits.shape == targets.shape
    S = logits.shape[-1]
    # masked_mean is over the last dim and .mean() averages the rest, so flattening
    # leading dims into a row axis is exact.
    x = logits.reshape(-1, S)
    t = targets.reshape(-1, S)
    B = x.shape[0]

    masked = masks is not None
    if masked:
        m = jnp.broadcast_to(masks, logits.shape).reshape(-1, S)
        if m.dtype == jnp.bool_:
            m = m.astype(jnp.int8)   # 1 byte/elem stream; cast to f32 in-kernel
        # TODO(synk): add a length-based fast path (scalar-prefetch lengths + in-kernel
        # iota mask) to avoid streaming the mask from HBM when masks are prefix masks.

    # ---- Sequence tiling: lane-aligned, zero extra traffic beyond 128-pad. ----
    S_pad = _round_up(S, 128)
    ts = _pick_divisor_tile(S_pad, 128, 2048)

    # ---- Batch tiling: big blocks (~2 MiB per data input per step). ----
    align = 32 if masked else 8              # int8 masks pack 32 rows / vreg
    B_al = _round_up(B, align)
    target_elems = max(1, (2 * 1024 * 1024) // x.dtype.itemsize)
    desired_tb = min(1024, _round_up(max(1, target_elems // ts), align))
    tb = min(desired_tb, B_al)
    # Split the batch into >= 2 grid steps (free padding-wise) so v7x megacore can shard.
    if tb == B_al and B_al >= 2 * align and (B_al // 2) % align == 0:
        tb = B_al // 2
    B_pad = _round_up(B, tb)

    x = _pad2d(x, B_pad, S_pad)
    t = _pad2d(t, B_pad, S_pad)
    if masked:
        m = _pad2d(m, B_pad, S_pad)

    grid = (B_pad // tb, S_pad // ts)        # reduction (seq) axis last

    data_spec = pl.BlockSpec((tb, ts), lambda i, k: (i, k))
    out_spec = pl.BlockSpec((tb, 1), lambda i, k: (i, 0))

    # VMEM budget from the real double-buffered footprint (+ headroom for in-kernel
    # f32 temporaries), capped for v7x's 64 MiB per-core VMEM.
    in_bytes = tb * ts * (x.dtype.itemsize + t.dtype.itemsize
                          + (m.dtype.itemsize if masked else 0))
    scratch_bytes = tb * 128 * 4 * (2 if masked else 1)
    vmem_limit = min(56 << 20, max(32 << 20, 2 * in_bytes + scratch_bytes + (16 << 20)))

    compiler_params = pltpu.CompilerParams(
        dimension_semantics=("parallel", "arbitrary"),
        vmem_limit_bytes=int(vmem_limit),
    )

    if masked:
        grid_spec = pltpu.PrefetchScalarGridSpec(
            num_scalar_prefetch=0,
            grid=grid,
            in_specs=[data_spec, data_spec, data_spec],
            out_specs=out_spec,
            scratch_shapes=[pltpu.VMEM((tb, 128), jnp.float32),
                            pltpu.VMEM((tb, 128), jnp.float32)],
        )
        per_row = pl.pallas_call(
            _mse_masked_kernel,
            out_shape=jax.ShapeDtypeStruct((B_pad, 1), jnp.float32),
            grid_spec=grid_spec,
            compiler_params=compiler_params,
        )(x, t, m)
    else:
        kernel = functools.partial(_mse_unmasked_kernel, seq_len=float(S))
        grid_spec = pltpu.PrefetchScalarGridSpec(
            num_scalar_prefetch=0,
            grid=grid,
            in_specs=[data_spec, data_spec],
            out_specs=out_spec,
            scratch_shapes=[pltpu.VMEM((tb, 128), jnp.float32)],
        )
        per_row = pl.pallas_call(
            kernel,
            out_shape=jax.ShapeDtypeStruct((B_pad, 1), jnp.float32),
            grid_spec=grid_spec,
            compiler_params=compiler_params,
        )(x, t)

    # Drop padded rows, then the trivial mean over B scalars (kept outside the kernel
    # so the batch grid axis can stay "parallel").
    return jnp.mean(per_row[:B])


def _reference(logits, targets, masks=None):
    S = logits.shape[-1]
    x = logits.reshape(-1, S).astype(jnp.float32)
    t = targets.reshape(-1, S).astype(jnp.float32)
    sq = (x - t) ** 2
    if masks is None:
        per_row = jnp.mean(sq, axis=-1)
    else:
        m = jnp.broadcast_to(masks, logits.shape).reshape(-1, S).astype(jnp.float32)
        per_row = jnp.sum(sq * m, axis=-1) / jnp.sum(m, axis=-1)
    return jnp.mean(per_row)


if __name__ == "__main__":
    key = jax.random.PRNGKey(0)
    k1, k2, k3, k4, k5 = jax.random.split(key, 5)

    # --- Test 1: masked, bf16 data + int8 masks (small: batch=2, seq=8, hidden=32) ---
    Bt, Tt, Ht = 2, 8, 32
    logits = jax.random.normal(k1, (Bt, Tt, Ht), dtype=jnp.float32).astype(jnp.bfloat16)
    targets = jax.random.normal(k2, (Bt, Tt, Ht), dtype=jnp.float32).astype(jnp.bfloat16)
    lens = jax.random.randint(k3, (Bt, Tt, 1), minval=1, maxval=Ht + 1)
    masks = (jnp.arange(Ht)[None, None, :] < lens).astype(jnp.int8)

    loss1 = mse_loss(logits, targets, masks)
    jax.block_until_ready(loss1)
    ref1 = _reference(logits, targets, masks)
    assert jnp.allclose(loss1, ref1, rtol=2e-5, atol=2e-5), (loss1, ref1)

    # --- Test 2: unmasked, f32, odd shape exercising the padding path ---
    x2 = jax.random.normal(k4, (2, 3, 100), dtype=jnp.float32)
    t2 = jax.random.normal(k5, (2, 3, 100), dtype=jnp.float32)
    loss2 = mse_loss(x2, t2, None)
    jax.block_until_ready(loss2)
    ref2 = _reference(x2, t2, None)
    assert jnp.allclose(loss2, ref2, rtol=2e-5, atol=2e-5), (loss2, ref2)

    print("KERNEL_OK")
</pallas_src>

<mosaic_0001>
module attributes {stable_mosaic.version = 11 : i64} {
  func.func @_mse_masked_kernel(%arg0: i32, %arg1: i32, %arg2: memref<32x128xbf16, #tpu.memory_space<vmem>>, %arg3: memref<32x128xbf16, #tpu.memory_space<vmem>>, %arg4: memref<32x128xi8, #tpu.memory_space<vmem>>, %arg5: memref<32x1xf32, #tpu.memory_space<vmem>>, %arg6: memref<32x128xf32, #tpu.memory_space<vmem>>, %arg7: memref<32x128xf32, #tpu.memory_space<vmem>>) attributes {dimension_semantics = [#tpu.dimension_semantics<parallel>, #tpu.dimension_semantics<arbitrary>], iteration_bounds = array<i64: 1, 1>, scalar_prefetch = 0 : i64, scratch_operands = 2 : i64, tpu.core_type = #tpu.core_type<tc>, window_params = [{transform_indices = @transform_0, window_bounds = array<i64: 32, 128>}, {transform_indices = @transform_1, window_bounds = array<i64: 32, 128>}, {transform_indices = @transform_2, window_bounds = array<i64: 32, 128>}, {transform_indices = @transform_3, window_bounds = array<i64: 32, 1>}]} {
    %c0_i32 = arith.constant 0 : i32
    %0 = arith.cmpi eq, %arg1, %c0_i32 : i32
    %1 = arith.extui %0 : i1 to i32
    %c0_i32_0 = arith.constant 0 : i32
    %2 = arith.cmpi ne, %1, %c0_i32_0 : i32
    scf.if %2 {
      %cst = arith.constant 0.000000e+00 : f32
      %21 = vector.broadcast %cst : f32 to vector<32x128xf32>
      %c0_16 = arith.constant 0 : index
      %c0_17 = arith.constant 0 : index
      %22 = vector.load %arg6[%c0_16, %c0_17] : memref<32x128xf32, #tpu.memory_space<vmem>>, vector<32x128xf32>
      tpu.vector_store %arg6[%c0_16, %c0_17], %21 {strides = array<i32>} : memref<32x128xf32, #tpu.memory_space<vmem>>, vector<32x128xf32>,
      %cst_18 = arith.constant 0.000000e+00 : f32
      %23 = vector.broadcast %cst_18 : f32 to vector<32x128xf32>
      %c0_19 = arith.constant 0 : index
      %c0_20 = arith.constant 0 : index
      %24 = vector.load %arg7[%c0_19, %c0_20] : memref<32x128xf32, #tpu.memory_space<vmem>>, vector<32x128xf32>
      tpu.vector_store %arg7[%c0_19, %c0_20], %23 {strides = array<i32>} : memref<32x128xf32, #tpu.memory_space<vmem>>, vector<32x128xf32>,
    } else {
    }
    %c0 = arith.constant 0 : index
    %c0_1 = arith.constant 0 : index
    %3 = vector.load %arg2[%c0, %c0_1] : memref<32x128xbf16, #tpu.memory_space<vmem>>, vector<32x128xbf16>
    %4 = arith.extf %3 : vector<32x128xbf16> to vector<32x128xf32>
    %c0_2 = arith.constant 0 : index
    %c0_3 = arith.constant 0 : index
    %5 = vector.load %arg3[%c0_2, %c0_3] : memref<32x128xbf16, #tpu.memory_space<vmem>>, vector<32x128xbf16>
    %6 = arith.extf %5 : vector<32x128xbf16> to vector<32x128xf32>
    %c0_4 = arith.constant 0 : index
    %c0_5 = arith.constant 0 : index
    %7 = vector.load %arg4[%c0_4, %c0_5] : memref<32x128xi8, #tpu.memory_space<vmem>>, vector<32x128xi8>
    %8 = arith.sitofp %7 : vector<32x128xi8> to vector<32x128xf32>
    %9 = arith.subf %4, %6 : vector<32x128xf32>
    %c0_6 = arith.constant 0 : index
    %c0_7 = arith.constant 0 : index
    %10 = vector.load %arg6[%c0_6, %c0_7] : memref<32x128xf32, #tpu.memory_space<vmem>>, vector<32x128xf32>
    %11 = arith.mulf %9, %9 : vector<32x128xf32>
    %12 = arith.mulf %11, %8 : vector<32x128xf32>
    %13 = arith.addf %10, %12 : vector<32x128xf32>
    %c0_8 = arith.constant 0 : index
    %c0_9 = arith.constant 0 : index
    %14 = vector.load %arg6[%c0_8, %c0_9] : memref<32x128xf32, #tpu.memory_space<vmem>>, vector<32x128xf32>
    tpu.vector_store %arg6[%c0_8, %c0_9], %13 {strides = array<i32>} : memref<32x128xf32, #tpu.memory_space<vmem>>, vector<32x128xf32>,
    %c0_10 = arith.constant 0 : index
    %c0_11 = arith.constant 0 : index
    %15 = vector.load %arg7[%c0_10, %c0_11] : memref<32x128xf32, #tpu.memory_space<vmem>>, vector<32x128xf32>
    %16 = arith.addf %15, %8 : vector<32x128xf32>
    %c0_12 = arith.constant 0 : index
    %c0_13 = arith.constant 0 : index
    %17 = vector.load %arg7[%c0_12, %c0_13] : memref<32x128xf32, #tpu.memory_space<vmem>>, vector<32x128xf32>
    tpu.vector_store %arg7[%c0_12, %c0_13], %16 {strides = array<i32>} : memref<32x128xf32, #tpu.memory_space<vmem>>, vector<32x128xf32>,
    %c0_i32_14 = arith.constant 0 : i32
    %18 = arith.cmpi eq, %arg1, %c0_i32_14 : i32
    %19 = arith.extui %18 : i1 to i32
    %c0_i32_15 = arith.constant 0 : i32
    %20 = arith.cmpi ne, %19, %c0_i32_15 : i32
    scf.if %20 {
      %c0_16 = arith.constant 0 : index
      %c0_17 = arith.constant 0 : index
      %21 = vector.load %arg6[%c0_16, %c0_17] : memref<32x128xf32, #tpu.memory_space<vmem>>, vector<32x128xf32>
      %cst = arith.constant dense<0.000000e+00> : vector<32xf32>
      %22 = vector.multi_reduction <add>, %21, %cst [1] : vector<32x128xf32> to vector<32xf32>
      %23 = vector.shape_cast %22 : vector<32xf32> to vector<32x1xf32>
      %c0_18 = arith.constant 0 : index
      %c0_19 = arith.constant 0 : index
      %24 = vector.load %arg7[%c0_18, %c0_19] : memref<32x128xf32, #tpu.memory_space<vmem>>, vector<32x128xf32>
      %cst_20 = arith.constant dense<0.000000e+00> : vector<32xf32>
      %25 = vector.multi_reduction <add>, %24, %cst_20 [1] : vector<32x128xf32> to vector<32xf32>
      %26 = vector.shape_cast %25 : vector<32xf32> to vector<32x1xf32>
      %27 = arith.divf %23, %26 : vector<32x1xf32>
      %c0_21 = arith.constant 0 : index
      %c0_22 = arith.constant 0 : index
      %28 = vector.load %arg5[%c0_21, %c0_22] : memref<32x1xf32, #tpu.memory_space<vmem>>, vector<32x1xf32>
      tpu.vector_store %arg5[%c0_21, %c0_22], %27 {strides = array<i32>} : memref<32x1xf32, #tpu.memory_space<vmem>>, vector<32x1xf32>,
    } else {
    }
    return
  }
  func.func @transform_0(%arg0: i32, %arg1: i32) -> (i32, i32) {
    %c0_i32 = arith.constant 0 : i32
    return %arg0, %arg1 : i32, i32
  }
  func.func @transform_1(%arg0: i32, %arg1: i32) -> (i32, i32) {
    %c0_i32 = arith.constant 0 : i32
    return %arg0, %arg1 : i32, i32
  }
  func.func @transform_2(%arg0: i32, %arg1: i32) -> (i32, i32) {
    %c0_i32 = arith.constant 0 : i32
    return %arg0, %arg1 : i32, i32
  }
  func.func @transform_3(%arg0: i32, %arg1: i32) -> (i32, i32) {
    %c0_i32 = arith.constant 0 : i32
    %c0_i32_0 = arith.constant 0 : i32
    return %arg0, %c0_i32 : i32, i32
  }
}

</mosaic_0001>

<llo_original>
// kernel: tpu_custom_call.1
$region0: #{tpu_custom_call.1}
  #allocation0 [shape = 'u32[]', space=smem, size = 0x4, offset = 0x4, fixed_abs, tag = 'smem constant byte address 0x4 - core index']
  #allocation1 [shape = 'u32[72,128]{1,0:T(1,128)}', space=vmem, size = 0x9000, scoped, tag = 'internal scratch']
  #allocation2 [shape = 'f32[32,128]{1,0:T(8,128)}', space=vmem, size = 0x4000, scoped, tag = 'scratch operand']
  #allocation3 [shape = 'f32[32,128]{1,0:T(8,128)}', space=vmem, size = 0x4000, scoped, tag = 'scratch operand']
  %s0 = inlined_call_operand.hbm [shape: bf16[32,128], index: 0, kind: input, shape index: {}]
  %s1 = inlined_call_operand.hbm [shape: bf16[32,128], index: 1, kind: input, shape index: {}]
  %s2 = inlined_call_operand.hbm [shape: s8[32,128], index: 2, kind: input, shape index: {}]
  %s3 = inlined_call_operand.vmem [shape: f32[32,1], index: 3, kind: output, shape index: {}]
  %s4 = sld [smem:[#allocation0]]
  $region42: #{tpu_custom_call.1} parent=0
    _
  %s6 = ssub.s32 1, %s4
  %s7 = scalar_select 0, %s6, %s4
  $region1: #{tpu_custom_call.1} parent=0
    #allocation4 [shape = 'u8[8192]{0}', space=vmem, size = 0x2000, scoped, tag = 'input window, operand 0, single buffered']
    #allocation5 [shape = 's32[1]{0}', space=sflag, size = 0x4, scoped, tag = 'scoped memory for tpu_custom_call.1']
    #allocation6 [shape = 'u8[8192]{0}', space=vmem, size = 0x2000, scoped, tag = 'input window, operand 1, single buffered']
    #allocation7 [shape = 's32[1]{0}', space=sflag, size = 0x4, scoped, tag = 'scoped memory for tpu_custom_call.1']
    #allocation8 [shape = 'u8[4096]{0}', space=vmem, size = 0x1000, scoped, tag = 'input window, operand 2, single buffered']
    %8 = vsyncpa [#allocation5], 0
    %9 = vsyncpa [#allocation7], 0
    // Predicated region
    $region2: #{tpu_custom_call.1} parent=1 // pred_check
      _
    $region3: #{tpu_custom_call.1} parent=1 // pred_check_branch
      %11 = sbr.rel (0) target = $region5
    $region4: #{tpu_custom_call.1} parent=1 // pred_region
      %13 = vsyncadd [#allocation5], 0
      %s14 = sshll.u32 %s0, 4
      %s15 = int_to_ptr.hbm [resolvable:$true] %s14
      %s16 = sshll.u32 [#allocation4], 4
      %s17 = int_to_ptr.vmem [resolvable:$true] %s16
      %22 = dma.hbm_to_vmem [thread:$0]  %s15, 256, %s17, [#allocation5], 64, 64, 4
    $region5: #{tpu_custom_call.1} parent=1 // pred_fallthru
      _
    // Predicated region
    $region6: #{tpu_custom_call.1} parent=1 // pred_check
      _
    $region7: #{tpu_custom_call.1} parent=1 // pred_check_branch
      %24 = sbr.rel (0) target = $region9
    $region8: #{tpu_custom_call.1} parent=1 // pred_region
      %26 = vsyncadd [#allocation7], 0
      %s27 = sshll.u32 %s1, 4
      %s28 = int_to_ptr.hbm [resolvable:$true] %s27
      %s29 = sshll.u32 [#allocation6], 4
      %s30 = int_to_ptr.vmem [resolvable:$true] %s29
      %35 = dma.hbm_to_vmem [thread:$0]  %s28, 256, %s30, [#allocation7], 64, 64, 4
    $region9: #{tpu_custom_call.1} parent=1 // pred_fallthru
      _
    // Predicated region
    $region10: #{tpu_custom_call.1} parent=1 // pred_check
      _
    $region11: #{tpu_custom_call.1} parent=1 // pred_check_branch
      %37 = sbr.rel (0) target = $region13
    $region12: #{tpu_custom_call.1} parent=1 // pred_region
      %39 = vsyncadd [#allocation7], 0
      %s41 = sshll.u32 %s2, 4
      %s42 = int_to_ptr.hbm [resolvable:$true] %s41
      %s43 = sshll.u32 [#allocation8], 4
      %s44 = int_to_ptr.vmem [resolvable:$true] %s43
      %46 = dma.hbm_to_vmem [thread:$0]  %s42, 128, %s44, [#allocation7]
    $region13: #{tpu_custom_call.1} parent=1 // pred_fallthru
      _
    // Predicated region
    $region14: #{tpu_custom_call.1} parent=1 // pred_check
      _
    $region15: #{tpu_custom_call.1} parent=1 // pred_check_branch
      %48 = sbr.rel (0) target = $region17
    $region16: #{tpu_custom_call.1} parent=1 // pred_region
      %50 = dma.done [#allocation5], 256
    $region17: #{tpu_custom_call.1} parent=1 // pred_fallthru
      _
    // Predicated region
    $region18: #{tpu_custom_call.1} parent=1 // pred_check
      _
    $region19: #{tpu_custom_call.1} parent=1 // pred_check_branch
      %52 = sbr.rel (0) target = $region21
    $region20: #{tpu_custom_call.1} parent=1 // pred_region
      %54 = dma.done [#allocation7], 256
    $region21: #{tpu_custom_call.1} parent=1 // pred_fallthru
      _
    // Predicated region
    $region22: #{tpu_custom_call.1} parent=1 // pred_check
      _
    $region23: #{tpu_custom_call.1} parent=1 // pred_check_branch
      %56 = sbr.rel (0) target = $region25
    $region24: #{tpu_custom_call.1} parent=1 // pred_region
      %58 = dma.done [#allocation7], 128
    $region25: #{tpu_custom_call.1} parent=1 // pred_fallthru
      _
    %p59 = scmp.eq.s32.totalorder 0, 0
    // Predicated region
    $region26: #{tpu_custom_call.1} parent=1 // pred_check
      %p60 = pneg %p59
    $region27: #{tpu_custom_call.1} parent=1 // pred_check_branch
      %62 = sbr.rel (%p60) target = $region29
    $region28: #{tpu_custom_call.1} parent=1 // pred_region
      %63 = vst [vmem:[#allocation2] sm:$0xff] 0.0
      %64 = vst [vmem:[#allocation2 + $0x8] sm:$0xff] 0.0
      %65 = vst [vmem:[#allocation2 + $0x10] sm:$0xff] 0.0
      %66 = vst [vmem:[#allocation2 + $0x18] sm:$0xff] 0.0
      %67 = vst [vmem:[#allocation3] sm:$0xff] 0.0
      %68 = vst [vmem:[#allocation3 + $0x8] sm:$0xff] 0.0
      %69 = vst [vmem:[#allocation3 + $0x10] sm:$0xff] 0.0
      %70 = vst [vmem:[#allocation3 + $0x18] sm:$0xff] 0.0
    $region29: #{tpu_custom_call.1} parent=1 // pred_fallthru
      _
    %v71 = vld [vmem:[#allocation4] sm:$0xf]
    %v72 = vld [vmem:[#allocation4 + $0x4] sm:$0xf]
    %v73 = vld [vmem:[#allocation4 + $0x8] sm:$0xf]
    %v74 = vld [vmem:[#allocation4 + $0xc] sm:$0xf]
    %v75 = vunpack.c.l.bf16 %v71
    %v76 = vunpack.c.l.bf16 %v72
    %v77 = vunpack.c.l.bf16 %v73
    %v78 = vunpack.c.l.bf16 %v74
    %v79 = vld [vmem:[#allocation6] sm:$0xf]
    %v80 = vld [vmem:[#allocation6 + $0x4] sm:$0xf]
    %v81 = vld [vmem:[#allocation6 + $0x8] sm:$0xf]
    %v82 = vld [vmem:[#allocation6 + $0xc] sm:$0xf]
    %v83 = vunpack.c.l.bf16 %v79
    %v84 = vunpack.c.l.bf16 %v80
    %v85 = vunpack.c.l.bf16 %v81
    %v86 = vunpack.c.l.bf16 %v82
    %v87 = vld [vmem:[#allocation8] sm:$0xff]
    %v88 = vunpack.c.0.s8 %v87
    %v89 = vunpack.c.1.s8 %v87
    %v90 = vunpack.c.2.s8 %v87
    %v91 = vunpack.c.3.s8 %v87
    %v92 = vcvt.s32.f32 %v88
    %v93 = vcvt.s32.f32 %v89
    %v94 = vcvt.s32.f32 %v90
    %v95 = vcvt.s32.f32 %v91
    %v96 = vsub.f32 %v75, %v83
    %v97 = vsub.f32 %v76, %v84
    %v98 = vsub.f32 %v77, %v85
    %v99 = vsub.f32 %v78, %v86
    %v100 = vld [vmem:[#allocation2] sm:$0xff]
    %v101 = vld [vmem:[#allocation2 + $0x8] sm:$0xff]
    %v102 = vld [vmem:[#allocation2 + $0x10] sm:$0xff]
    %v103 = vld [vmem:[#allocation2 + $0x18] sm:$0xff]
    %v104 = vmul.f32 %v96, %v96
    %v105 = vmul.f32 %v97, %v97
    %v106 = vmul.f32 %v98, %v98
    %v107 = vmul.f32 %v99, %v99
    %v108 = vmul.f32 %v104, %v92
    %v109 = vmul.f32 %v105, %v93
    %v110 = vmul.f32 %v106, %v94
    %v111 = vmul.f32 %v107, %v95
    %v112 = vadd.f32 %v100, %v108
    %v113 = vadd.f32 %v101, %v109
    %v114 = vadd.f32 %v102, %v110
    %v115 = vadd.f32 %v103, %v111
    %116 = vst [vmem:[#allocation2] sm:$0xff] %v112
    %117 = vst [vmem:[#allocation2 + $0x8] sm:$0xff] %v113
    %118 = vst [vmem:[#allocation2 + $0x10] sm:$0xff] %v114
    %119 = vst [vmem:[#allocation2 + $0x18] sm:$0xff] %v115
    %v120 = vld [vmem:[#allocation3] sm:$0xff]
    %v121 = vld [vmem:[#allocation3 + $0x8] sm:$0xff]
    %v122 = vld [vmem:[#allocation3 + $0x10] sm:$0xff]
    %v123 = vld [vmem:[#allocation3 + $0x18] sm:$0xff]
    %v124 = vadd.f32 %v120, %v92
    %v125 = vadd.f32 %v121, %v93
    %v126 = vadd.f32 %v122, %v94
    %v127 = vadd.f32 %v123, %v95
    %128 = vst [vmem:[#allocation3] sm:$0xff] %v124
    %129 = vst [vmem:[#allocation3 + $0x8] sm:$0xff] %v125
    %130 = vst [vmem:[#allocation3 + $0x10] sm:$0xff] %v126
    %131 = vst [vmem:[#allocation3 + $0x18] sm:$0xff] %v127
    // Predicated region
    $region30: #{tpu_custom_call.1} parent=1 // pred_check
      %p132 = pneg %p59
    $region31: #{tpu_custom_call.1} parent=1 // pred_check_branch
      %134 = sbr.rel (%p132) target = $region33
    $region32: #{tpu_custom_call.1} parent=1 // pred_region
      %v135 = vld [vmem:[#allocation2] sm:$0xff]
      %v136 = vld [vmem:[#allocation2 + $0x8] sm:$0xff]
      %v137 = vld [vmem:[#allocation2 + $0x10] sm:$0xff]
      %v138 = vld [vmem:[#allocation2 + $0x18] sm:$0xff]
      %139 = vadd.xlane.f32.xlu0 %v135
      %v140 = vpop.xlane.xlu0 %139
      %141 = vadd.xlane.f32.xlu0 %v136
      %v142 = vpop.xlane.xlu0 %141
      %143 = vadd.xlane.f32.xlu0 %v137
      %v144 = vpop.xlane.xlu0 %143
      %145 = vadd.xlane.f32.xlu0 %v138
      %v146 = vpop.xlane.xlu0 %145
      %v147 = vld [vmem:[#allocation3] sm:$0xff]
      %v148 = vld [vmem:[#allocation3 + $0x8] sm:$0xff]
      %v149 = vld [vmem:[#allocation3 + $0x10] sm:$0xff]
      %v150 = vld [vmem:[#allocation3 + $0x18] sm:$0xff]
      %151 = vadd.xlane.f32.xlu0 %v147
      %v152 = vpop.xlane.xlu0 %151
      %153 = vadd.xlane.f32.xlu0 %v148
      %v154 = vpop.xlane.xlu0 %153
      %155 = vadd.xlane.f32.xlu0 %v149
      %v156 = vpop.xlane.xlu0 %155
      %157 = vadd.xlane.f32.xlu0 %v150
      %v158 = vpop.xlane.xlu0 %157
      %v159 = vrcp.pop %v152
      %v160 = vmul.f32 %v152, %v159
      %v161 = vsub.f32 1.0, %v160
      %v162 = vmul.f32 %v159, %v161
      %v163 = vadd.f32 %v159, %v162
      %vm164 = vweird.f32 %v152
      %vm165 = vweird.f32 %v159
      %vm166 = vmor %vm164, %vm165
      %v167 = vsel %vm166, %v159, %v163
      %v168 = vand.u32 2147483647, %v152
      %vm169 = vcmp.eq.f32.partialorder %v168, 8.507059e+37
      %v170 = vand.u32 %v152, 2147483648
      %v171 = vor.u32 1.1754944e-38, %v170
      %v172 = vsel %vm169, %v171, %v167
      %v173 = vmul.f32 %v140, %v172
      %v174 = vrcp.pop %v154
      %v175 = vmul.f32 %v154, %v174
      %v176 = vsub.f32 1.0, %v175
      %v177 = vmul.f32 %v174, %v176
      %v178 = vadd.f32 %v174, %v177
      %vm179 = vweird.f32 %v154
      %vm180 = vweird.f32 %v174
      %vm181 = vmor %vm179, %vm180
      %v182 = vsel %vm181, %v174, %v178
      %v183 = vand.u32 2147483647, %v154
      %vm184 = vcmp.eq.f32.partialorder %v183, 8.507059e+37
      %v185 = vand.u32 %v154, 2147483648
      %v186 = vor.u32 1.1754944e-38, %v185
      %v187 = vsel %vm184, %v186, %v182
      %v188 = vmul.f32 %v142, %v187
      %v189 = vrcp.pop %v156
      %v190 = vmul.f32 %v156, %v189
      %v191 = vsub.f32 1.0, %v190
      %v192 = vmul.f32 %v189, %v191
      %v193 = vadd.f32 %v189, %v192
      %vm194 = vweird.f32 %v156
      %vm195 = vweird.f32 %v189
      %vm196 = vmor %vm194, %vm195
      %v197 = vsel %vm196, %v189, %v193
      %v198 = vand.u32 2147483647, %v156
      %vm199 = vcmp.eq.f32.partialorder %v198, 8.507059e+37
      %v200 = vand.u32 %v156, 2147483648
      %v201 = vor.u32 1.1754944e-38, %v200
      %v202 = vsel %vm199, %v201, %v197
      %v203 = vmul.f32 %v144, %v202
      %v204 = vrcp.pop %v158
      %v205 = vmul.f32 %v158, %v204
      %v206 = vsub.f32 1.0, %v205
      %v207 = vmul.f32 %v204, %v206
      %v208 = vadd.f32 %v204, %v207
      %vm209 = vweird.f32 %v158
      %vm210 = vweird.f32 %v204
      %vm211 = vmor %vm209, %vm210
      %v212 = vsel %vm211, %v204, %v208
      %v213 = vand.u32 2147483647, %v158
      %vm214 = vcmp.eq.f32.partialorder %v213, 8.507059e+37
      %v215 = vand.u32 %v158, 2147483648
      %v216 = vor.u32 1.1754944e-38, %v215
      %v217 = vsel %vm214, %v216, %v212
      %v218 = vmul.f32 %v146, %v217
      %vm219 = vcmask 7168
      %220 = vst.msk [vmem:[%s3] sm:$0xff] %vm219, %v173
      %221 = vst.msk [vmem:[%s3 + $0x8] sm:$0xff] %vm219, %v188
      %222 = vst.msk [vmem:[%s3 + $0x10] sm:$0xff] %vm219, %v203
      %223 = vst.msk [vmem:[%s3 + $0x18] sm:$0xff] %vm219, %v218
    $region33: #{tpu_custom_call.1} parent=1 // pred_fallthru
      _
    // Predicated region
    $region34: #{tpu_custom_call.1} parent=1 // pred_check
      _
    $region35: #{tpu_custom_call.1} parent=1 // pred_check_branch
      %225 = sbr.rel (0) target = $region37
    $region36: #{tpu_custom_call.1} parent=1 // pred_region
      _
    $region37: #{tpu_custom_call.1} parent=1 // pred_fallthru
      _
    // Predicated region
    $region38: #{tpu_custom_call.1} parent=1 // pred_check
      _
    $region39: #{tpu_custom_call.1} parent=1 // pred_check_branch
      %227 = sbr.rel (0) target = $region41
    $region40: #{tpu_custom_call.1} parent=1 // pred_region
      _
    $region41: #{tpu_custom_call.1} parent=1 // pred_fallthru
      _
    %228 = vsyncpa [#allocation5], 1
    %229 = vsyncpa [#allocation7], 1

</llo_original>
